<compile_context>
chip_gen: v6e
topology: v6e:2x2x1
jax: 0.10.0
libtpu: 0.0.40
codegen_flags: <defaults>
</compile_context>

<pallas_src>
import math

import jax
import jax.numpy as jnp
from jax.experimental import pallas as pl
from jax.experimental.pallas import tpu as pltpu


def _round_up(x, m):
    return (x + m - 1) // m * m


_GELU_C = math.sqrt(2.0 / math.pi)


def _gelu_tanh(x):
    # DeepSpeed inference gelu uses the tanh approximation.
    return 0.5 * x * (1.0 + jnp.tanh(_GELU_C * (x + 0.044715 * x * x * x)))


def _tpu_hw():
    """Return (vmem_capacity_bytes, is_v5e, is_v7x) with defensive fallbacks."""
    kind = ""
    try:
        kind = jax.devices()[0].device_kind.lower()
    except Exception:
        pass
    capacity = None
    try:
        capacity = int(pltpu.get_tpu_info().vmem_capacity_bytes)
    except Exception:
        capacity = None
    is_v7 = "v7" in kind
    is_v5e = ("v5e" in kind) or ("v5 lite" in kind) or ("v5lite" in kind)
    if capacity is None or capacity <= 0:
        if is_v7:
            capacity = 64 << 20
        elif any(g in kind for g in ("v4", "v5", "v6")):
            capacity = 128 << 20
        else:
            capacity = 64 << 20
    return capacity, is_v5e, is_v7


def _make_kernel(accumulate_in_out: bool, gelu_bf16: bool):
    """Build the MLP kernel. Two variants:
       - accumulate_in_out: o_ref (f32) doubles as the accumulator (no scratch).
       - otherwise: f32 VMEM scratch accumulator + cast on finalize."""

    def _act(inter_f32, target_dtype):
        if gelu_bf16:
            # v6e/v7x: halve VALU/vreg pressure; tanh stays on the (idle) EUP slot.
            return _gelu_tanh(inter_f32.astype(jnp.bfloat16)).astype(target_dtype)
        # v5e: no bf16 VPU/EUP -> keep the epilogue in f32.
        return _gelu_tanh(inter_f32).astype(target_dtype)

    if accumulate_in_out:
        def kernel(x_ref, w1_ref, b1_ref, w2_ref, b2_ref, o_ref):
            k = pl.program_id(1)

            @pl.when(k == 0)
            def _init():
                o_ref[...] = jnp.zeros_like(o_ref)

            inter = jnp.dot(x_ref[...], w1_ref[...],
                            preferred_element_type=jnp.float32) + b1_ref[...]
            inter = _act(inter, w2_ref.dtype)
            o_ref[...] += jnp.dot(inter, w2_ref[...],
                                  preferred_element_type=jnp.float32)

            @pl.when(k == pl.num_programs(1) - 1)
            def _finalize():
                o_ref[...] += b2_ref[...]

        return kernel

    def kernel(x_ref, w1_ref, b1_ref, w2_ref, b2_ref, o_ref, acc_ref):
        k = pl.program_id(1)

        @pl.when(k == 0)
        def _init():
            acc_ref[...] = jnp.zeros_like(acc_ref)

        inter = jnp.dot(x_ref[...], w1_ref[...],
                        preferred_element_type=jnp.float32) + b1_ref[...]
        inter = _act(inter, w2_ref.dtype)
        acc_ref[...] += jnp.dot(inter, w2_ref[...],
                                preferred_element_type=jnp.float32)

        @pl.when(k == pl.num_programs(1) - 1)
        def _finalize():
            o_ref[...] = (acc_ref[...] + b2_ref[...]).astype(o_ref.dtype)

    return kernel


def _maybe_buffered_spec(shape, index_map, nbuf):
    """Weight-panel BlockSpec, triple-buffered when requested (v5e)."""
    if nbuf > 2:
        try:
            return pl.BlockSpec(shape, index_map, pipeline_mode=pl.Buffered(nbuf))
        except TypeError:
            pass  # older API without pipeline_mode -> default double-buffering
    return pl.BlockSpec(shape, index_map)


def prepare_moe_mlp_weights(inter_w, inter_b, output_w, output_b, *,
                            ti=256, compute_dtype=jnp.bfloat16):
    """Cast + pad the expert weights ONCE. Cache the returned dict across calls so
    the per-call wrapper never re-reads/re-writes the weight matrices in HBM."""
    H, I = inter_w.shape
    H_pad = _round_up(H, 128)
    ti_eff = min(ti, _round_up(I, 128))
    I_pad = _round_up(I, ti_eff)
    # Zero padding is semantics-preserving: padded I columns give gelu(0+0)=0 and
    # the corresponding W2 rows are zero; padded H columns are sliced off.
    w1 = jnp.pad(inter_w.astype(compute_dtype), ((0, H_pad - H), (0, I_pad - I)))
    w2 = jnp.pad(output_w.astype(compute_dtype), ((0, I_pad - I), (0, H_pad - H)))
    b1 = jnp.pad(inter_b.astype(jnp.float32), (0, I_pad - I)).reshape(1, I_pad)
    b2 = jnp.pad(output_b.astype(jnp.float32), (0, H_pad - H)).reshape(1, H_pad)
    # TODO(synk): optional fp8 weight path for v7x (per-channel scales in the f32
    # epilogue) would halve weight HBM bytes in the small-per-expert-M regime.
    return {"w1": w1, "b1": b1, "w2": w2, "b2": b2,
            "H": H, "I": I, "H_pad": H_pad, "I_pad": I_pad,
            "ti": ti_eff, "compute_dtype": jnp.dtype(compute_dtype)}


def _plan_tiles(M, H_pad, ti, compute_dtype, out_dtype, capacity, is_v5e, is_v7,
                tm=None):
    cd = jnp.dtype(compute_dtype).itemsize
    accumulate_in_out = jnp.dtype(out_dtype) == jnp.dtype(jnp.float32)
    ob = 4 if accumulate_in_out else jnp.dtype(out_dtype).itemsize
    align = 16 if cd == 2 else 8          # bf16 packs two rows per sublane
    nbuf_w = 3 if is_v5e else 2           # deeper weight pipelining on v5e

    def vmem_need(t):
        n = 2 * t * H_pad * cd                         # x tile (double buffered)
        n += nbuf_w * (H_pad * ti + ti * H_pad) * cd   # w1 + w2 panels
        n += 2 * (ti + H_pad) * 4                      # biases
        n += 2 * t * H_pad * ob                        # output tile
        if not accumulate_in_out:
            n += t * H_pad * 4                         # f32 accumulator scratch
        n += t * ti * 4                                # live f32 intermediate slab
        return n

    budget = int(0.70 * capacity)
    # Generation-aware token-tile cap: v5e ridge ~240 flops/byte -> 256 is enough;
    # v6e/v7x ridges are ~600-700 -> grow tm (v7x limited by 64 MiB VMEM).
    tm_cap = tm if tm is not None else (256 if is_v5e else (512 if is_v7 else 640))
    tm_full = _round_up(M, align)

    tm_eff = align
    for cand in (16, 32, 64, 128, 192, 256, 384, 512, 640, 768):
        if cand <= tm_cap and cand <= tm_full and vmem_need(cand) <= budget:
            tm_eff = cand
    if tm_full <= tm_cap and vmem_need(tm_full) <= budget:
        tm_eff = tm_full   # small problems: one token tile

    # VMEM limit: capacity-aware (~85%), never the full physical VMEM (leave room
    # for compiler internal scratch / semaphores / spill slots).
    vmem_limit = min(int(0.85 * capacity),
                     max(int(1.3 * vmem_need(tm_eff)), 32 << 20))
    vmem_limit = max(vmem_limit, int(vmem_need(tm_eff)) + (2 << 20))
    return tm_eff, int(vmem_limit), accumulate_in_out, nbuf_w, align


def deepspeed_moe_mlp_prepared(x, params, *, tm=None):
    """x: [B, S, H]; params: output of prepare_moe_mlp_weights(). Returns [B, S, H]."""
    B, S, H = x.shape
    assert H == params["H"], "hidden size mismatch"
    M = B * S
    out_dtype = x.dtype
    compute_dtype = params["compute_dtype"]
    H_pad, I_pad, ti = params["H_pad"], params["I_pad"], params["ti"]

    capacity, is_v5e, is_v7 = _tpu_hw()
    tm_eff, vmem_limit, acc_in_out, nbuf_w, align = _plan_tiles(
        M, H_pad, ti, compute_dtype, out_dtype, capacity, is_v5e, is_v7, tm=tm)
    M_pad = _round_up(M, tm_eff)

    x2d = x.reshape(M, H)
    if x2d.dtype != compute_dtype:
        x2d = x2d.astype(compute_dtype)
    if (M_pad, H_pad) != (M, H):
        x2d = jnp.pad(x2d, ((0, M_pad - M), (0, H_pad - H)))

    grid = (M_pad // tm_eff, I_pad // ti)
    n_token_tiles = grid[0]

    gelu_bf16 = (not is_v5e) and jnp.dtype(compute_dtype) == jnp.dtype(jnp.bfloat16)
    kernel = _make_kernel(acc_in_out, gelu_bf16)

    in_specs = [
        pl.BlockSpec((tm_eff, H_pad), lambda i, k: (i, 0)),          # x tile
        _maybe_buffered_spec((H_pad, ti), lambda i, k: (0, k), nbuf_w),  # inter_w panel
        pl.BlockSpec((1, ti), lambda i, k: (0, k)),                  # inter_b panel
        _maybe_buffered_spec((ti, H_pad), lambda i, k: (k, 0), nbuf_w),  # output_w panel
        pl.BlockSpec((1, H_pad), lambda i, k: (0, 0)),               # output_b
    ]
    out_spec = pl.BlockSpec((tm_eff, H_pad), lambda i, k: (i, 0))
    scratch_shapes = [] if acc_in_out else [pltpu.VMEM((tm_eff, H_pad), jnp.float32)]

    cd = jnp.dtype(compute_dtype).itemsize
    ob = 4 if acc_in_out else jnp.dtype(out_dtype).itemsize
    cost = pl.CostEstimate(
        flops=4 * M_pad * H_pad * I_pad,                 # two matmuls
        transcendentals=M_pad * I_pad,                   # tanh per inter element
        bytes_accessed=(M_pad * H_pad * cd               # x read
                        + n_token_tiles * 2 * H_pad * I_pad * cd   # W1+W2 re-streamed
                        + n_token_tiles * (I_pad + H_pad) * 4      # biases
                        + M_pad * H_pad * ob),                     # output write
    )

    out2d = pl.pallas_call(
        kernel,
        out_shape=jax.ShapeDtypeStruct(
            (M_pad, H_pad), jnp.float32 if acc_in_out else out_dtype),
        grid_spec=pltpu.PrefetchScalarGridSpec(
            num_scalar_prefetch=0,
            grid=grid,
            in_specs=in_specs,
            out_specs=out_spec,
            scratch_shapes=scratch_shapes,
        ),
        compiler_params=pltpu.CompilerParams(
            dimension_semantics=("parallel", "arbitrary"),
            vmem_limit_bytes=vmem_limit,
        ),
        cost_estimate=cost,
    )(x2d, params["w1"], params["b1"], params["w2"], params["b2"])

    return out2d[:M, :H].astype(out_dtype).reshape(B, S, H)


def deepspeed_moe_mlp(x, inter_w, inter_b, output_w, output_b, *,
                      tm=None, ti=256, compute_dtype=jnp.bfloat16):
    """Convenience path (casts/pads weights per call). For real MoE sizes, call
    prepare_moe_mlp_weights() once and reuse via deepspeed_moe_mlp_prepared()."""
    params = prepare_moe_mlp_weights(inter_w, inter_b, output_w, output_b,
                                     ti=ti, compute_dtype=compute_dtype)
    return deepspeed_moe_mlp_prepared(x, params, tm=tm)


if __name__ == "__main__":
    # Small config consistent with the module: hidden=32, intermediate=4*32.
    B, S, H = 2, 8, 32
    I = 4 * H  # intermediate_size (mp_group=None -> no tensor-parallel sharding)

    key = jax.random.PRNGKey(0)
    k_x, k_w1, k_b1, k_w2, k_b2, k_nw, k_nb = jax.random.split(key, 7)

    x = jax.random.normal(k_x, (B, S, H), dtype=jnp.float32)
    inter_w = jax.random.normal(k_w1, (H, I), dtype=jnp.float32) * 0.05
    inter_b = jax.random.normal(k_b1, (I,), dtype=jnp.float32) * 0.05
    output_w = jax.random.normal(k_w2, (I, H), dtype=jnp.float32) * 0.05
    output_b = jax.random.normal(k_b2, (H,), dtype=jnp.float32) * 0.05
    # attn_nw / attn_nb exist on the module but are unused in forward():
    attn_nw = jax.random.normal(k_nw, (H,), dtype=jnp.float32)
    attn_nb = jax.random.normal(k_nb, (H,), dtype=jnp.float32)
    # TODO(synk): q_int8 quantized path and mp_group all_reduce are not implemented.

    # Weights prepared ONCE (cast + pad), then reused for every forward call.
    params = prepare_moe_mlp_weights(inter_w, inter_b, output_w, output_b)
    out = deepspeed_moe_mlp_prepared(x, params)
    out = jax.block_until_ready(out)

    # Reference 1: same bf16-fed / f32-accumulate path in pure JAX (tight check).
    _, is_v5e, _ = _tpu_hw()
    xb = x.reshape(-1, H).astype(jnp.bfloat16)
    w1b = inter_w.astype(jnp.bfloat16)
    w2b = output_w.astype(jnp.bfloat16)
    inter = jnp.dot(xb, w1b, preferred_element_type=jnp.float32) + inter_b
    if is_v5e:
        inter = _gelu_tanh(inter)                      # kernel keeps f32 gelu on v5e
    else:
        inter = _gelu_tanh(inter.astype(jnp.bfloat16))  # kernel uses bf16 gelu
    ref_bf16 = (jnp.dot(inter.astype(jnp.bfloat16), w2b,
                        preferred_element_type=jnp.float32) + output_b)
    ref_bf16 = ref_bf16.reshape(B, S, H)
    assert jnp.allclose(out, ref_bf16, atol=4e-3, rtol=4e-3), \
        "mismatch vs bf16-path reference"

    # Reference 2: full fp32 math (loose check for the bf16 compute path).
    ref_f32 = (_gelu_tanh(x.reshape(-1, H) @ inter_w + inter_b)
               @ output_w + output_b).reshape(B, S, H)
    assert jnp.allclose(out, ref_f32, atol=3e-2, rtol=3e-2), \
        "mismatch vs fp32 reference"

    print("KERNEL_OK")
</pallas_src>

<mosaic_0001>
module attributes {stable_mosaic.version = 11 : i64} {
  func.func @kernel(%arg0: i32, %arg1: i32, %arg2: memref<16x128xbf16, #tpu.memory_space<vmem>>, %arg3: memref<128x128xbf16, #tpu.memory_space<vmem>>, %arg4: memref<1x128xf32, #tpu.memory_space<vmem>>, %arg5: memref<128x128xbf16, #tpu.memory_space<vmem>>, %arg6: memref<1x128xf32, #tpu.memory_space<vmem>>, %arg7: memref<16x128xf32, #tpu.memory_space<vmem>>) attributes {dimension_semantics = [#tpu.dimension_semantics<parallel>, #tpu.dimension_semantics<arbitrary>], iteration_bounds = array<i64: 1, 1>, scalar_prefetch = 0 : i64, scratch_operands = 0 : i64, tpu.core_type = #tpu.core_type<tc>, window_params = [{transform_indices = @transform_0, window_bounds = array<i64: 16, 128>}, {transform_indices = @transform_1, window_bounds = array<i64: 128, 128>}, {transform_indices = @transform_2, window_bounds = array<i64: 1, 128>}, {transform_indices = @transform_3, window_bounds = array<i64: 128, 128>}, {pipeline_mode = #tpu.pipeline_mode<synchronous>, transform_indices = @transform_4, window_bounds = array<i64: 1, 128>}, {transform_indices = @transform_5, window_bounds = array<i64: 16, 128>}]} {
    %c0_i32 = arith.constant 0 : i32
    %0 = arith.cmpi eq, %arg1, %c0_i32 : i32
    %1 = arith.extui %0 : i1 to i32
    %c0_i32_0 = arith.constant 0 : i32
    %2 = arith.cmpi ne, %1, %c0_i32_0 : i32
    scf.if %2 {
      %cst_19 = arith.constant 0.000000e+00 : f32
      %31 = vector.broadcast %cst_19 : f32 to vector<16x128xf32>
      %c0_20 = arith.constant 0 : index
      %c0_21 = arith.constant 0 : index
      %32 = vector.load %arg7[%c0_20, %c0_21] : memref<16x128xf32, #tpu.memory_space<vmem>>, vector<16x128xf32>
      tpu.vector_store %arg7[%c0_20, %c0_21], %31 {strides = array<i32>} : memref<16x128xf32, #tpu.memory_space<vmem>>, vector<16x128xf32>,
    } else {
    }
    %c0 = arith.constant 0 : index
    %c0_1 = arith.constant 0 : index
    %3 = vector.load %arg2[%c0, %c0_1] : memref<16x128xbf16, #tpu.memory_space<vmem>>, vector<16x128xbf16>
    %c0_2 = arith.constant 0 : index
    %c0_3 = arith.constant 0 : index
    %4 = vector.load %arg3[%c0_2, %c0_3] : memref<128x128xbf16, #tpu.memory_space<vmem>>, vector<128x128xbf16>
    %cst = arith.constant dense<0.000000e+00> : vector<16x128xf32>
    %5 = tpu.matmul %3, %4, %cst {dimension_numbers = #tpu.dot_dimension_numbers<[1], [0], [0], [1], [0, 0, 1, 1], [], []>} : vector<16x128xbf16>, vector<128x128xbf16>, vector<16x128xf32> -> vector<16x128xf32>
    %c0_4 = arith.constant 0 : index
    %c0_5 = arith.constant 0 : index
    %6 = vector.load %arg4[%c0_4, %c0_5] : memref<1x128xf32, #tpu.memory_space<vmem>>, vector<1x128xf32>
    %7 = vector.broadcast %6 : vector<1x128xf32> to vector<16x128xf32>
    %8 = arith.addf %5, %7 : vector<16x128xf32>
    %9 = arith.truncf %8 : vector<16x128xf32> to vector<16x128xbf16>
    %cst_6 = arith.constant 5.000000e-01 : bf16
    %10 = vector.broadcast %cst_6 : bf16 to vector<16x128xbf16>
    %11 = arith.mulf %10, %9 : vector<16x128xbf16>
    %cst_7 = arith.constant 4.467770e-02 : bf16
    %12 = vector.broadcast %cst_7 : bf16 to vector<16x128xbf16>
    %13 = arith.mulf %12, %9 : vector<16x128xbf16>
    %14 = arith.mulf %13, %9 : vector<16x128xbf16>
    %15 = arith.mulf %14, %9 : vector<16x128xbf16>
    %16 = arith.addf %9, %15 : vector<16x128xbf16>
    %cst_8 = arith.constant 7.968750e-01 : bf16
    %17 = vector.broadcast %cst_8 : bf16 to vector<16x128xbf16>
    %18 = arith.mulf %17, %16 : vector<16x128xbf16>
    %19 = math.tanh %18 : vector<16x128xbf16>
    %cst_9 = arith.constant 1.000000e+00 : bf16
    %20 = vector.broadcast %cst_9 : bf16 to vector<16x128xbf16>
    %21 = arith.addf %20, %19 : vector<16x128xbf16>
    %22 = arith.mulf %11, %21 : vector<16x128xbf16>
    %c0_10 = arith.constant 0 : index
    %c0_11 = arith.constant 0 : index
    %23 = vector.load %arg7[%c0_10, %c0_11] : memref<16x128xf32, #tpu.memory_space<vmem>>, vector<16x128xf32>
    %c0_12 = arith.constant 0 : index
    %c0_13 = arith.constant 0 : index
    %24 = vector.load %arg5[%c0_12, %c0_13] : memref<128x128xbf16, #tpu.memory_space<vmem>>, vector<128x128xbf16>
    %cst_14 = arith.constant dense<0.000000e+00> : vector<16x128xf32>
    %25 = tpu.matmul %22, %24, %cst_14 {dimension_numbers = #tpu.dot_dimension_numbers<[1], [0], [0], [1], [0, 0, 1, 1], [], []>} : vector<16x128xbf16>, vector<128x128xbf16>, vector<16x128xf32> -> vector<16x128xf32>
    %26 = arith.addf %23, %25 : vector<16x128xf32>
    %c0_15 = arith.constant 0 : index
    %c0_16 = arith.constant 0 : index
    %27 = vector.load %arg7[%c0_15, %c0_16] : memref<16x128xf32, #tpu.memory_space<vmem>>, vector<16x128xf32>
    tpu.vector_store %arg7[%c0_15, %c0_16], %26 {strides = array<i32>} : memref<16x128xf32, #tpu.memory_space<vmem>>, vector<16x128xf32>,
    %c0_i32_17 = arith.constant 0 : i32
    %28 = arith.cmpi eq, %arg1, %c0_i32_17 : i32
    %29 = arith.extui %28 : i1 to i32
    %c0_i32_18 = arith.constant 0 : i32
    %30 = arith.cmpi ne, %29, %c0_i32_18 : i32
    scf.if %30 {
      %c0_19 = arith.constant 0 : index
      %c0_20 = arith.constant 0 : index
      %31 = vector.load %arg7[%c0_19, %c0_20] : memref<16x128xf32, #tpu.memory_space<vmem>>, vector<16x128xf32>
      %c0_21 = arith.constant 0 : index
      %c0_22 = arith.constant 0 : index
      %32 = vector.load %arg6[%c0_21, %c0_22] : memref<1x128xf32, #tpu.memory_space<vmem>>, vector<1x128xf32>
      %33 = vector.broadcast %32 : vector<1x128xf32> to vector<16x128xf32>
      %34 = arith.addf %31, %33 : vector<16x128xf32>
      %c0_23 = arith.constant 0 : index
      %c0_24 = arith.constant 0 : index
      %35 = vector.load %arg7[%c0_23, %c0_24] : memref<16x128xf32, #tpu.memory_space<vmem>>, vector<16x128xf32>
      tpu.vector_store %arg7[%c0_23, %c0_24], %34 {strides = array<i32>} : memref<16x128xf32, #tpu.memory_space<vmem>>, vector<16x128xf32>,
    } else {
    }
    return
  }
  func.func @transform_0(%arg0: i32, %arg1: i32) -> (i32, i32) {
    %c0_i32 = arith.constant 0 : i32
    %c0_i32_0 = arith.constant 0 : i32
    return %arg0, %c0_i32 : i32, i32
  }
  func.func @transform_1(%arg0: i32, %arg1: i32) -> (i32, i32) {
    %c0_i32 = arith.constant 0 : i32
    %c0_i32_0 = arith.constant 0 : i32
    return %c0_i32, %arg1 : i32, i32
  }
  func.func @transform_2(%arg0: i32, %arg1: i32) -> (i32, i32) {
    %c0_i32 = arith.constant 0 : i32
    %c0_i32_0 = arith.constant 0 : i32
    return %c0_i32, %arg1 : i32, i32
  }
  func.func @transform_3(%arg0: i32, %arg1: i32) -> (i32, i32) {
    %c0_i32 = arith.constant 0 : i32
    %c0_i32_0 = arith.constant 0 : i32
    return %arg1, %c0_i32 : i32, i32
  }
  func.func @transform_4(%arg0: i32, %arg1: i32) -> (i32, i32) {
    %c0_i32 = arith.constant 0 : i32
    %c0_i32_0 = arith.constant 0 : i32
    %c0_i32_1 = arith.constant 0 : i32
    return %c0_i32, %c0_i32_0 : i32, i32
  }
  func.func @transform_5(%arg0: i32, %arg1: i32) -> (i32, i32) {
    %c0_i32 = arith.constant 0 : i32
    %c0_i32_0 = arith.constant 0 : i32
    return %arg0, %c0_i32 : i32, i32
  }
}

</mosaic_0001>

<llo_original>
// kernel: tpu_custom_call.1
$region0: #{tpu_custom_call.1}
  #allocation0 [shape = 'u32[]', space=smem, size = 0x4, offset = 0x4, fixed_abs, tag = 'smem constant byte address 0x4 - core index']
  #allocation1 [shape = 'u32[144,128]{1,0:T(1,128)}', space=vmem, size = 0x12000, scoped, tag = 'internal scratch']
  %s0 = inlined_call_operand.hbm [shape: bf16[16,128], index: 0, kind: input, shape index: {}]
  %s1 = inlined_call_operand.hbm [shape: bf16[128,128], index: 1, kind: input, shape index: {}]
  %s2 = inlined_call_operand.vmem [shape: f32[1,128], index: 2, kind: input, shape index: {}]
  %s3 = inlined_call_operand.hbm [shape: bf16[128,128], index: 3, kind: input, shape index: {}]
  %s4 = inlined_call_operand.vmem [shape: f32[1,128], index: 4, kind: input, shape index: {}]
  %s5 = inlined_call_operand.hbm [shape: f32[16,128], index: 5, kind: output, shape index: {}]
  %s6 = sld [smem:[#allocation0]]
  $region50: #{tpu_custom_call.1} parent=0
    _
  %s8 = ssub.s32 1, %s6
  %s9 = scalar_select 0, %s8, %s6
  $region1: #{tpu_custom_call.1} parent=0
    #allocation2 [shape = 'u8[4096]{0}', space=vmem, size = 0x1000, scoped, tag = 'input window, operand 0, single buffered']
    #allocation3 [shape = 's32[1]{0}', space=sflag, size = 0x4, scoped, tag = 'scoped memory for tpu_custom_call.1']
    #allocation4 [shape = 's32[1]{0}', space=sflag, size = 0x4, scoped, tag = 'scoped memory for tpu_custom_call.1']
    #allocation5 [shape = 'u8[32768]{0}', space=vmem, size = 0x8000, scoped, tag = 'input window, operand 1, single buffered']
    #allocation6 [shape = 's32[1]{0}', space=sflag, size = 0x4, scoped, tag = 'scoped memory for tpu_custom_call.1']
    #allocation7 [shape = 'u8[32768]{0}', space=vmem, size = 0x8000, scoped, tag = 'input window, operand 3, single buffered']
    #allocation8 [shape = 'u8[8192]{0}', space=vmem, size = 0x2000, scoped, tag = 'output window, operand 0, single buffered']
    %10 = vsyncpa [#allocation3], 0
    %11 = vsyncpa [#allocation6], 0
    %12 = vsyncpa [#allocation4], 0
    // Predicated region
    $region2: #{tpu_custom_call.1} parent=1 // pred_check
      _
    $region3: #{tpu_custom_call.1} parent=1 // pred_check_branch
      %14 = sbr.rel (0) target = $region5
    $region4: #{tpu_custom_call.1} parent=1 // pred_region
      %s16 = ssub.s32 128, 128
      %17 = vsyncadd [#allocation3], %s16
      %s18 = sshll.u32 [#allocation2], 4
      %s19 = int_to_ptr.vmem [resolvable:$true] %s18
      %24 = dma.hbm_to_vmem [thread:$0]  %s0, 128, %s19, [#allocation3], 64, 64, 4
    $region5: #{tpu_custom_call.1} parent=1 // pred_fallthru
      _
    // Predicated region
    $region6: #{tpu_custom_call.1} parent=1 // pred_check
      _
    $region7: #{tpu_custom_call.1} parent=1 // pred_check_branch
      %26 = sbr.rel (0) target = $region9
    $region8: #{tpu_custom_call.1} parent=1 // pred_region
      %s28 = ssub.s32 1024, 1024
      %29 = vsyncadd [#allocation6], %s28
      %s30 = sshll.u32 [#allocation5], 4
      %s31 = int_to_ptr.vmem [resolvable:$true] %s30
      %36 = dma.hbm_to_vmem [thread:$0]  %s1, 1024, %s31, [#allocation6], 64, 64, 4
    $region9: #{tpu_custom_call.1} parent=1 // pred_fallthru
      _
    // Predicated region
    $region10: #{tpu_custom_call.1} parent=1 // pred_check
      _
    $region11: #{tpu_custom_call.1} parent=1 // pred_check_branch
      %38 = sbr.rel (0) target = $region13
    $region12: #{tpu_custom_call.1} parent=1 // pred_region
      _
    $region13: #{tpu_custom_call.1} parent=1 // pred_fallthru
      _
    // Predicated region
    $region14: #{tpu_custom_call.1} parent=1 // pred_check
      _
    $region15: #{tpu_custom_call.1} parent=1 // pred_check_branch
      %40 = sbr.rel (0) target = $region17
    $region16: #{tpu_custom_call.1} parent=1 // pred_region
      %s42 = ssub.s32 1024, 1024
      %43 = vsyncadd [#allocation6], %s42
      %s44 = sshll.u32 [#allocation7], 4
      %s45 = int_to_ptr.vmem [resolvable:$true] %s44
      %50 = dma.hbm_to_vmem [thread:$0]  %s3, 1024, %s45, [#allocation6], 64, 64, 4
    $region17: #{tpu_custom_call.1} parent=1 // pred_fallthru
      _
    // Predicated region
    $region18: #{tpu_custom_call.1} parent=1 // pred_check
      _
    $region19: #{tpu_custom_call.1} parent=1 // pred_check_branch
      %52 = sbr.rel (0) target = $region21
    $region20: #{tpu_custom_call.1} parent=1 // pred_region
      _
    $region21: #{tpu_custom_call.1} parent=1 // pred_fallthru
      _
    // Predicated region
    $region22: #{tpu_custom_call.1} parent=1 // pred_check
      _
    $region23: #{tpu_custom_call.1} parent=1 // pred_check_branch
      %54 = sbr.rel (0) target = $region25
    $region24: #{tpu_custom_call.1} parent=1 // pred_region
      %55 = dma.done [#allocation3], 128
    $region25: #{tpu_custom_call.1} parent=1 // pred_fallthru
      _
    // Predicated region
    $region26: #{tpu_custom_call.1} parent=1 // pred_check
      _
    $region27: #{tpu_custom_call.1} parent=1 // pred_check_branch
      %57 = sbr.rel (0) target = $region29
    $region28: #{tpu_custom_call.1} parent=1 // pred_region
      %58 = dma.done [#allocation6], 1024
    $region29: #{tpu_custom_call.1} parent=1 // pred_fallthru
      _
    // Predicated region
    $region30: #{tpu_custom_call.1} parent=1 // pred_check
      _
    $region31: #{tpu_custom_call.1} parent=1 // pred_check_branch
      %60 = sbr.rel (0) target = $region33
    $region32: #{tpu_custom_call.1} parent=1 // pred_region
      %61 = dma.done [#allocation6], 1024
    $region33: #{tpu_custom_call.1} parent=1 // pred_fallthru
      _
    %p67 = scmp.eq.s32.totalorder 0, 0
    // Predicated region
    $region34: #{tpu_custom_call.1} parent=1 // pred_check
      %p68 = pneg %p67
    $region35: #{tpu_custom_call.1} parent=1 // pred_check_branch
      %70 = sbr.rel (%p68) target = $region37
    $region36: #{tpu_custom_call.1} parent=1 // pred_region
      %71 = vst [vmem:[#allocation8] sm:$0xff] 0.0
      %72 = vst [vmem:[#allocation8 + $0x8] sm:$0xff] 0.0
    $region37: #{tpu_custom_call.1} parent=1 // pred_fallthru
      _
    %v73 = vld [vmem:[#allocation2] sm:$0xf]
    %v74 = vld [vmem:[#allocation2 + $0x4] sm:$0xf]
    %v75 = vld [vmem:[#allocation5] sm:$0xf]
    %v76 = vld [vmem:[#allocation5 + $0x4] sm:$0xf]
    %v77 = vld [vmem:[#allocation5 + $0x8] sm:$0xf]
    %v78 = vld [vmem:[#allocation5 + $0xc] sm:$0xf]
    %v79 = vld [vmem:[#allocation5 + $0x10] sm:$0xf]
    %v80 = vld [vmem:[#allocation5 + $0x14] sm:$0xf]
    %v81 = vld [vmem:[#allocation5 + $0x18] sm:$0xf]
    %v82 = vld [vmem:[#allocation5 + $0x1c] sm:$0xf]
    %v83 = vld [vmem:[#allocation5 + $0x20] sm:$0xf]
    %v84 = vld [vmem:[#allocation5 + $0x24] sm:$0xf]
    %v85 = vld [vmem:[#allocation5 + $0x28] sm:$0xf]
    %v86 = vld [vmem:[#allocation5 + $0x2c] sm:$0xf]
    %v87 = vld [vmem:[#allocation5 + $0x30] sm:$0xf]
    %v88 = vld [vmem:[#allocation5 + $0x34] sm:$0xf]
    %v89 = vld [vmem:[#allocation5 + $0x38] sm:$0xf]
    %v90 = vld [vmem:[#allocation5 + $0x3c] sm:$0xf]
    %v91 = vld [vmem:[%s2] sm:$0x1]
    %v93 = vlaneseq
    %v94 = vshrl.u32 %v93, 7
    %v95 = vsub.s32 0, %v94
    %v96 = vrot.slane %v91, %v95
    %v100 = vunpack.c.l.b16 %v73
    %v101 = vunpack.c.l.b16 %v74
    %v102 = vpack.c.b16 %v101, %v100
    %v120 = vunpack.c.l.b16 %v75
    %v121 = vunpack.c.l.b16 %v76
    %v122 = vunpack.c.l.b16 %v77
    %v123 = vunpack.c.l.b16 %v78
    %v124 = vunpack.c.l.b16 %v79
    %v125 = vunpack.c.l.b16 %v80
    %v126 = vunpack.c.l.b16 %v81
    %v127 = vunpack.c.l.b16 %v82
    %v128 = vunpack.c.l.b16 %v83
    %v129 = vunpack.c.l.b16 %v84
    %v130 = vunpack.c.l.b16 %v85
    %v131 = vunpack.c.l.b16 %v86
    %v132 = vunpack.c.l.b16 %v87
    %v133 = vunpack.c.l.b16 %v88
    %v134 = vunpack.c.l.b16 %v89
    %v135 = vunpack.c.l.b16 %v90
    %v136 = vpack.c.b16 %v121, %v120
    %v137 = vpack.c.b16 %v123, %v122
    %v138 = vpack.c.b16 %v125, %v124
    %v139 = vpack.c.b16 %v127, %v126
    %v140 = vpack.c.b16 %v129, %v128
    %v141 = vpack.c.b16 %v131, %v130
    %v142 = vpack.c.b16 %v133, %v132
    %v143 = vpack.c.b16 %v135, %v134
    %152 = vmatprep.subr.bf16.mxu0 0
    %153 = vmatpush1.bf16.msra.mxu0 %v143
    %154 = vmatprep.subr.bf16.mxu0 0
    %155 = vmatpush1.bf16.msra.mxu0 %v142
    %156 = vmatprep.subr.bf16.mxu0 0
    %157 = vmatpush1.bf16.msra.mxu0 %v141
    %158 = vmatprep.subr.bf16.mxu0 0
    %159 = vmatpush1.bf16.msra.mxu0 %v140
    %160 = vmatprep.subr.bf16.mxu0 0
    %161 = vmatpush1.bf16.msra.mxu0 %v139
    %162 = vmatprep.subr.bf16.mxu0 0
    %163 = vmatpush1.bf16.msra.mxu0 %v138
    %164 = vmatprep.subr.bf16.mxu0 0
    %165 = vmatpush1.bf16.msra.mxu0 %v137
    %166 = vmatprep.subr.bf16.mxu0 0
    %167 = vmatpush1.bf16.msra.mxu0 %v136
    %168 = vmatprep.subr.bf16.mxu0 0
    %169 = vmatpush2.bf16.msra.mxu0 0
    %170 = vmatprep.subr.bf16.mxu0 0
    %171 = vmatpush2.bf16.msra.mxu0 0
    %172 = vmatprep.subr.bf16.mxu0 0
    %173 = vmatpush2.bf16.msra.mxu0 0
    %174 = vmatprep.subr.bf16.mxu0 0
    %175 = vmatpush2.bf16.msra.mxu0 0
    %176 = vmatprep.subr.bf16.mxu0 0
    %177 = vmatpush2.bf16.msra.mxu0 0
    %178 = vmatprep.subr.bf16.mxu0 0
    %179 = vmatpush2.bf16.msra.mxu0 0
    %180 = vmatprep.subr.bf16.mxu0 0
    %181 = vmatpush2.bf16.msra.mxu0 0
    %182 = vmatprep.subr.bf16.mxu0 0
    %183 = vmatpush2.bf16.msra.mxu0 0
    %184 = vmatprep.mubr.bf16.mxu0 0
    %185 = vmatmul.mubr.bf16.gmra.mxu0 %v102
    %v186 = vpop.f32.mrf.mxu0
    %v187 = vadd.f32 %v96, %v186
    %v188 = vpop.f32.mrf.mxu0
    %v189 = vpop.f32.mrf.mxu0
    %v190 = vadd.f32 %v96, %v189
    %v191 = vpop.f32.mrf.mxu0
    %192 = vdwg.mxu0
    %v193 = vpack.c.bf16 %v190, %v187
    %v194 = vmul.bf16 %v193, 1056980736
    %v195 = vmul.bf16 %v193, 1027030327
    %v196 = vmul.bf16 %v195, %v193
    %v197 = vmul.bf16 %v196, %v193
    %v198 = vadd.bf16 %v193, %v197
    %v199 = vmul.bf16 %v198, 1061961548
    %v200 = vtanh.bf16.pop %v199
    %v201 = vadd.bf16 %v200, 1065369472
    %v202 = vmul.bf16 %v194, %v201
    %v203 = vld [vmem:[#allocation8] sm:$0xff]
    %v204 = vld [vmem:[#allocation8 + $0x8] sm:$0xff]
    %v205 = vld [vmem:[#allocation7] sm:$0xf]
    %v206 = vld [vmem:[#allocation7 + $0x4] sm:$0xf]
    %v207 = vld [vmem:[#allocation7 + $0x8] sm:$0xf]
    %v208 = vld [vmem:[#allocation7 + $0xc] sm:$0xf]
    %v209 = vld [vmem:[#allocation7 + $0x10] sm:$0xf]
    %v210 = vld [vmem:[#allocation7 + $0x14] sm:$0xf]
    %v211 = vld [vmem:[#allocation7 + $0x18] sm:$0xf]
    %v212 = vld [vmem:[#allocation7 + $0x1c] sm:$0xf]
    %v213 = vld [vmem:[#allocation7 + $0x20] sm:$0xf]
    %v214 = vld [vmem:[#allocation7 + $0x24] sm:$0xf]
    %v215 = vld [vmem:[#allocation7 + $0x28] sm:$0xf]
    %v216 = vld [vmem:[#allocation7 + $0x2c] sm:$0xf]
    %v217 = vld [vmem:[#allocation7 + $0x30] sm:$0xf]
    %v218 = vld [vmem:[#allocation7 + $0x34] sm:$0xf]
    %v219 = vld [vmem:[#allocation7 + $0x38] sm:$0xf]
    %v220 = vld [vmem:[#allocation7 + $0x3c] sm:$0xf]
    %v237 = vunpack.c.l.b16 %v205
    %v238 = vunpack.c.l.b16 %v206
    %v239 = vunpack.c.l.b16 %v207
    %v240 = vunpack.c.l.b16 %v208
    %v241 = vunpack.c.l.b16 %v209
    %v242 = vunpack.c.l.b16 %v210
    %v243 = vunpack.c.l.b16 %v211
    %v244 = vunpack.c.l.b16 %v212
    %v245 = vunpack.c.l.b16 %v213
    %v246 = vunpack.c.l.b16 %v214
    %v247 = vunpack.c.l.b16 %v215
    %v248 = vunpack.c.l.b16 %v216
    %v249 = vunpack.c.l.b16 %v217
    %v250 = vunpack.c.l.b16 %v218
    %v251 = vunpack.c.l.b16 %v219
    %v252 = vunpack.c.l.b16 %v220
    %v253 = vpack.c.b16 %v238, %v237
    %v254 = vpack.c.b16 %v240, %v239
    %v255 = vpack.c.b16 %v242, %v241
    %v256 = vpack.c.b16 %v244, %v243
    %v257 = vpack.c.b16 %v246, %v245
    %v258 = vpack.c.b16 %v248, %v247
    %v259 = vpack.c.b16 %v250, %v249
    %v260 = vpack.c.b16 %v252, %v251
    %269 = vmatprep.subr.bf16.mxu0 0
    %270 = vmatpush1.bf16.msra.mxu0 %v260
    %271 = vmatprep.subr.bf16.mxu0 0
    %272 = vmatpush1.bf16.msra.mxu0 %v259
    %273 = vmatprep.subr.bf16.mxu0 0
    %274 = vmatpush1.bf16.msra.mxu0 %v258
    %275 = vmatprep.subr.bf16.mxu0 0
    %276 = vmatpush1.bf16.msra.mxu0 %v257
    %277 = vmatprep.subr.bf16.mxu0 0
    %278 = vmatpush1.bf16.msra.mxu0 %v256
    %279 = vmatprep.subr.bf16.mxu0 0
    %280 = vmatpush1.bf16.msra.mxu0 %v255
    %281 = vmatprep.subr.bf16.mxu0 0
    %282 = vmatpush1.bf16.msra.mxu0 %v254
    %283 = vmatprep.subr.bf16.mxu0 0
    %284 = vmatpush1.bf16.msra.mxu0 %v253
    %285 = vmatprep.subr.bf16.mxu0 0
    %286 = vmatpush2.bf16.msra.mxu0 0
    %287 = vmatprep.subr.bf16.mxu0 0
    %288 = vmatpush2.bf16.msra.mxu0 0
    %289 = vmatprep.subr.bf16.mxu0 0
    %290 = vmatpush2.bf16.msra.mxu0 0
    %291 = vmatprep.subr.bf16.mxu0 0
    %292 = vmatpush2.bf16.msra.mxu0 0
    %293 = vmatprep.subr.bf16.mxu0 0
    %294 = vmatpush2.bf16.msra.mxu0 0
    %295 = vmatprep.subr.bf16.mxu0 0
    %296 = vmatpush2.bf16.msra.mxu0 0
    %297 = vmatprep.subr.bf16.mxu0 0
    %298 = vmatpush2.bf16.msra.mxu0 0
    %299 = vmatprep.subr.bf16.mxu0 0
    %300 = vmatpush2.bf16.msra.mxu0 0
    %301 = vmatprep.mubr.bf16.mxu0 0
    %302 = vmatmul.mubr.bf16.gmra.mxu0 %v202
    %v303 = vpop.f32.mrf.mxu0
    %v304 = vadd.f32 0.0, %v303
    %v305 = vpop.f32.mrf.mxu0
    %v306 = vpop.f32.mrf.mxu0
    %v307 = vadd.f32 0.0, %v306
    %v308 = vpop.f32.mrf.mxu0
    %309 = vdwg.mxu0
    %v310 = vadd.f32 %v203, %v304
    %v311 = vadd.f32 %v204, %v307
    %312 = vst [vmem:[#allocation8] sm:$0xff] %v310
    %313 = vst [vmem:[#allocation8 + $0x8] sm:$0xff] %v311
    // Predicated region
    $region38: #{tpu_custom_call.1} parent=1 // pred_check
      %p314 = pneg %p67
    $region39: #{tpu_custom_call.1} parent=1 // pred_check_branch
      %316 = sbr.rel (%p314) target = $region41
    $region40: #{tpu_custom_call.1} parent=1 // pred_region
      %v317 = vld [vmem:[#allocation8] sm:$0xff]
      %v318 = vld [vmem:[#allocation8 + $0x8] sm:$0xff]
      %v319 = vld [vmem:[%s4] sm:$0x1]
      %v321 = vlaneseq
      %v322 = vshrl.u32 %v321, 7
      %v323 = vsub.s32 0, %v322
      %v324 = vrot.slane %v319, %v323
      %v326 = vadd.f32 %v317, %v324
      %v327 = vadd.f32 %v318, %v324
      %328 = vst [vmem:[#allocation8] sm:$0xff] %v326
      %329 = vst [vmem:[#allocation8 + $0x8] sm:$0xff] %v327
    $region41: #{tpu_custom_call.1} parent=1 // pred_fallthru
      _
    // Predicated region
    $region42: #{tpu_custom_call.1} parent=1 // pred_check
      _
    $region43: #{tpu_custom_call.1} parent=1 // pred_check_branch
      %331 = sbr.rel (0) target = $region45
    $region44: #{tpu_custom_call.1} parent=1 // pred_region
      %s333 = ssub.s32 256, 256
      %334 = vsyncadd [#allocation4], %s333
      %s335 = sshll.u32 [#allocation8], 4
      %s336 = int_to_ptr.vmem [resolvable:$true] %s335
      %341 = dma.vmem_to_hbm [thread:$0]  %s336, 256, %s5, [#allocation4], 128, 128, 8
    $region45: #{tpu_custom_call.1} parent=1 // pred_fallthru
      _
    // Predicated region
    $region46: #{tpu_custom_call.1} parent=1 // pred_check
      _
    $region47: #{tpu_custom_call.1} parent=1 // pred_check_branch
      %343 = sbr.rel (0) target = $region49
    $region48: #{tpu_custom_call.1} parent=1 // pred_region
      %344 = dma.done [#allocation4], 256
    $region49: #{tpu_custom_call.1} parent=1 // pred_fallthru
      _
    %345 = vsyncpa [#allocation3], 1
    %346 = vsyncpa [#allocation6], 1
    %347 = vsyncpa [#allocation4], 1

</llo_original>
